<compile_context>
chip_gen: v6e
topology: v6e:2x2x1
jax: 0.10.0
libtpu: 0.0.40
codegen_flags: <defaults>
</compile_context>

<pallas_src>
import functools

import jax
import jax.numpy as jnp
from jax.experimental import pallas as pl
from jax.experimental.pallas import tpu as pltpu

EPS = 1e-5


def _round_up(n, m):
    return (n + m - 1) // m * m


def _cdiv(a, b):
    return -(-a // b)


# -----------------------------------------------------------------------------
# Pass 1: masked per-tile batch statistics of z = Linear2(ReLU(Linear1(x))).
# -----------------------------------------------------------------------------
def _stats_kernel(x_ref, w1_ref, b1_ref, w2_ref, stats_ref, *, tb, b_real, mm_dtype):
    i = pl.program_id(0)
    x = x_ref[...]                                                  # (TB, F) f32
    h = jnp.dot(x.astype(mm_dtype), w1_ref[...],
                preferred_element_type=jnp.float32) + b1_ref[...]
    h = jnp.maximum(h, 0.0)                                         # Linear1 + ReLU
    z = jnp.dot(h.astype(mm_dtype), w2_ref[...],
                preferred_element_type=jnp.float32)                 # Linear2 (bias cancels in BN)
    # Mask rows past the true batch: the ragged last tile reads undefined data,
    # jnp.where (not multiply) keeps NaN/Inf garbage out of the statistics.
    row = i * tb + jax.lax.broadcasted_iota(jnp.int32, (tb, 1), 0)
    zv = jnp.where(row < b_real, z, 0.0)
    s1 = jnp.sum(zv, axis=0, keepdims=True)                         # (1, Fp) sum
    s2 = jnp.sum(zv * zv, axis=0, keepdims=True)                    # (1, Fp) sumsq
    stats_ref[0:2, :] = jnp.concatenate([s1, s2], axis=0)           # rows 2..7 unused


# -----------------------------------------------------------------------------
# Pass 2: out = x + z * scale + shift, with z recomputed in VMEM (no roundtrip).
# -----------------------------------------------------------------------------
def _fused_out_kernel(x_ref, w1_ref, b1_ref, w2_ref, scale_ref, shift_ref, o_ref,
                      *, f, mm_dtype):
    x = x_ref[...]                                                  # (TB, F) f32
    h = jnp.maximum(jnp.dot(x.astype(mm_dtype), w1_ref[...],
                            preferred_element_type=jnp.float32) + b1_ref[...], 0.0)
    z = jnp.dot(h.astype(mm_dtype), w2_ref[...],
                preferred_element_type=jnp.float32)                 # (TB, Fp)
    o_ref[...] = (x + z[:, :f] * scale_ref[...] + shift_ref[...]).astype(o_ref.dtype)


def prepare_params(w1, b1, w2, b2, gamma, beta, *, matmul_dtype=jnp.float32,
                   lane_multiple=128):
    """One-time (parameter-load-time) preprocessing, kept out of the hot path.

    * PyTorch (out,in) weights are transposed to (in,out); only the *output*
      (lane) dim is padded to `lane_multiple` -- the first matmul's contraction
      dim stays at the true F.
    * matmul_dtype=jnp.bfloat16 is recommended on v5e, v6e and v7x (MXUs are
      bf16-native; accumulation stays f32).  Use lane_multiple=256 on v6e/v7x
      only if a large-F config becomes compute-bound.
    * `b2` is accepted for API parity but unused: it cancels exactly inside
      training-mode BatchNorm.
    """
    del b2
    F = w1.shape[0]
    Fp = _round_up(F, lane_multiple)
    padn = Fp - F
    w1p = jnp.pad(w1.T.astype(matmul_dtype), ((0, 0), (0, padn)))      # (F, Fp)
    w2p = jnp.pad(w2.T.astype(matmul_dtype), ((0, padn), (0, padn)))   # (Fp, Fp)
    b1p = jnp.pad(b1.astype(jnp.float32), (0, padn)).reshape(1, Fp)
    return dict(w1=w1p, b1=b1p, w2=w2p,
                gamma=gamma.astype(jnp.float32), beta=beta.astype(jnp.float32),
                F=F, Fp=Fp, matmul_dtype=matmul_dtype)


def _residual_block(x, params, *, tile_b, single_buffer_consts):
    B, F = x.shape
    assert F == params["F"]
    Fp = params["Fp"]
    mm_dtype = params["matmul_dtype"]
    mm_bytes = jnp.dtype(mm_dtype).itemsize
    orig_dtype = x.dtype
    x = x.astype(jnp.float32)

    # Batch tiling: 8-aligned tiles; ensure >= 2 grid steps when possible so the
    # "parallel" axis can be sharded across v7x's two TensorCores.
    TB = min(_round_up(tile_b, 8), _round_up(B, 8))
    if _cdiv(B, TB) < 2 and B > 8:
        TB = _round_up(_cdiv(B, 2), 8)
    n_tiles = _cdiv(B, TB)

    # Scoped-VMEM budget, sized per chip.
    w_mult = 1 if single_buffer_consts else 2
    vmem_est = (w_mult * (F * Fp + Fp * Fp) * mm_bytes   # resident w1, w2
                + w_mult * Fp * 4                        # b1 (+ scale/shift)
                + 2 * 2 * TB * F * 4                     # double-buffered x / out tiles
                + 2 * TB * Fp * 4                        # h / z intermediates
                + 2 * 8 * Fp * 4                         # stats blocks
                + (4 << 20))                             # headroom
    try:
        vmem_cap = int(getattr(pltpu.get_tpu_info(), "vmem_capacity_bytes", 64 << 20))
    except Exception:
        vmem_cap = 64 << 20
    vmem_limit = int(min(max(vmem_est, 32 << 20), vmem_cap * 7 // 8))
    cparams = pltpu.CompilerParams(dimension_semantics=("parallel",),
                                   vmem_limit_bytes=vmem_limit)

    if single_buffer_consts:
        def const(shape):
            return pl.BlockSpec(shape, lambda i: (0,) * len(shape),
                                pipeline_mode=pl.Buffered(1))
    else:
        def const(shape):
            return pl.BlockSpec(shape, lambda i: (0,) * len(shape))

    def tile(shape):
        return pl.BlockSpec(shape, lambda i: (i, 0))

    # ---- Pass 1: masked per-tile BN statistics (no z writeback) -------------
    kernel1 = functools.partial(_stats_kernel, tb=TB, b_real=B, mm_dtype=mm_dtype)
    cost1 = pl.CostEstimate(
        flops=2 * B * F * Fp + 2 * B * Fp * Fp,
        transcendentals=0,
        bytes_accessed=(B * F * 4 + (F * Fp + Fp * Fp) * mm_bytes
                        + Fp * 4 + n_tiles * 8 * Fp * 4))
    stats = pl.pallas_call(
        kernel1,
        grid=(n_tiles,),
        in_specs=[
            tile((TB, F)),        # x tile (streamed)
            const((F, Fp)),       # w1 (VMEM-resident, single-buffered)
            const((1, Fp)),       # b1
            const((Fp, Fp)),      # w2
        ],
        out_specs=pl.BlockSpec((8, Fp), lambda i: (i, 0)),
        out_shape=jax.ShapeDtypeStruct((n_tiles * 8, Fp), jnp.float32),
        compiler_params=cparams,
        cost_estimate=cost1,
    )(x, params["w1"], params["b1"], params["w2"])

    # ---- Tiny O(F) reduction + BN fold (true feature width) ------------------
    stats = stats.reshape(n_tiles, 8, Fp)
    zsum = jnp.sum(stats[:, 0, :F], axis=0)
    zsq = jnp.sum(stats[:, 1, :F], axis=0)
    mean = zsum / B
    # TODO(synk): E[z^2]-E[z]^2 in f32 can lose precision vs a centered two-pass
    # variance for very large B; switch to per-tile centered partials (Chan
    # combine) if that regime matters.
    var = jnp.maximum(zsq / B - mean * mean, 0.0)        # biased (PyTorch BN)
    scale = (params["gamma"] * jax.lax.rsqrt(var + EPS)).reshape(1, F)
    shift = (params["beta"] - mean * scale[0]).reshape(1, F)

    # ---- Pass 2: recompute z, apply folded BN + residual, store out ---------
    kernel2 = functools.partial(_fused_out_kernel, f=F, mm_dtype=mm_dtype)
    cost2 = pl.CostEstimate(
        flops=2 * B * F * Fp + 2 * B * Fp * Fp + 3 * B * F,
        transcendentals=0,
        bytes_accessed=(2 * B * F * 4 + (F * Fp + Fp * Fp) * mm_bytes
                        + Fp * 4 + 2 * F * 4))
    out = pl.pallas_call(
        kernel2,
        grid=(n_tiles,),
        in_specs=[
            tile((TB, F)),        # x tile (streamed)
            const((F, Fp)),       # w1
            const((1, Fp)),       # b1
            const((Fp, Fp)),      # w2
            const((1, F)),        # folded BN scale
            const((1, F)),        # folded BN shift
        ],
        out_specs=tile((TB, F)),
        out_shape=jax.ShapeDtypeStruct((B, F), jnp.float32),
        compiler_params=cparams,
        cost_estimate=cost2,
    )(x, params["w1"], params["b1"], params["w2"], scale, shift)

    return out.astype(orig_dtype)


def residual_block(x, params, *, tile_b=1024):
    """x: (B, F); params from prepare_params(). Returns x + BN(MLP(x))."""
    try:
        return _residual_block(x, params, tile_b=tile_b, single_buffer_consts=True)
    except Exception:
        # Fallback for jax builds where pipeline_mode=pl.Buffered(1) is not
        # accepted on pallas_call operands: let Mosaic double-buffer the weights.
        return _residual_block(x, params, tile_b=tile_b, single_buffer_consts=False)


def reference(x, w1, b1, w2, b2, gamma, beta):
    h = jnp.maximum(x @ w1.T + b1, 0.0)
    z = h @ w2.T + b2
    mean = jnp.mean(z, axis=0, keepdims=True)
    var = jnp.mean((z - mean) ** 2, axis=0, keepdims=True)
    return x + (z - mean) / jnp.sqrt(var + EPS) * gamma + beta


if __name__ == "__main__":
    F = 32
    key = jax.random.PRNGKey(0)
    kx, k1, kb1, k2, kb2, kg, kb, kx2 = jax.random.split(key, 8)

    bound = 1.0 / (F ** 0.5)   # PyTorch nn.Linear default init range
    w1 = jax.random.uniform(k1, (F, F), minval=-bound, maxval=bound, dtype=jnp.float32)
    b1 = jax.random.uniform(kb1, (F,), minval=-bound, maxval=bound, dtype=jnp.float32)
    w2 = jax.random.uniform(k2, (F, F), minval=-bound, maxval=bound, dtype=jnp.float32)
    b2 = jax.random.uniform(kb2, (F,), minval=-bound, maxval=bound, dtype=jnp.float32)
    gamma = jax.random.uniform(kg, (F,), minval=0.5, maxval=1.5, dtype=jnp.float32)
    beta = jax.random.uniform(kb, (F,), minval=-0.5, maxval=0.5, dtype=jnp.float32)

    # --- f32 matmul path (exact PyTorch-f32 semantics) ------------------------
    params_f32 = prepare_params(w1, b1, w2, b2, gamma, beta,
                                matmul_dtype=jnp.float32)

    # Single exact tile.
    B = 8
    x = jax.random.normal(kx, (B, F), dtype=jnp.float32)
    out = jax.block_until_ready(residual_block(x, params_f32))
    ref = reference(x, w1, b1, w2, b2, gamma, beta)
    assert out.shape == (B, F)
    assert jnp.allclose(out, ref, atol=1e-4, rtol=1e-4), "f32 mismatch"

    # Ragged multi-tile grid (masked last tile, no wrapper-side padding).
    B2 = 20
    x2 = jax.random.normal(kx2, (B2, F), dtype=jnp.float32)
    out2 = jax.block_until_ready(residual_block(x2, params_f32, tile_b=8))
    ref2 = reference(x2, w1, b1, w2, b2, gamma, beta)
    assert out2.shape == (B2, F)
    assert jnp.allclose(out2, ref2, atol=1e-4, rtol=1e-4), "tiled f32 mismatch"

    # Default tile_b path: exercises the ">=2 grid steps" split (TB=16) and a
    # partially-valid last tile.
    out3 = jax.block_until_ready(residual_block(x2, params_f32))
    assert jnp.allclose(out3, ref2, atol=1e-4, rtol=1e-4), "split-tile f32 mismatch"

    # --- bf16 matmul path (recommended on v5e/v6e/v7x; BN/residual stay f32) --
    params_bf16 = prepare_params(w1, b1, w2, b2, gamma, beta,
                                 matmul_dtype=jnp.bfloat16)
    out_bf16 = jax.block_until_ready(residual_block(x, params_bf16))
    assert out_bf16.shape == (B, F)
    assert bool(jnp.all(jnp.isfinite(out_bf16)))
    assert jnp.allclose(out_bf16, ref, atol=2e-1, rtol=2e-1), "bf16 mismatch"

    print("KERNEL_OK")
</pallas_src>

<mosaic_0001>
module attributes {stable_mosaic.version = 11 : i64} {
  func.func @_stats_kernel(%arg0: i32, %arg1: memref<8x32xf32, #tpu.memory_space<vmem>>, %arg2: memref<32x128xf32, #tpu.memory_space<vmem>>, %arg3: memref<1x128xf32, #tpu.memory_space<vmem>>, %arg4: memref<128x128xf32, #tpu.memory_space<vmem>>, %arg5: memref<8x128xf32, #tpu.memory_space<vmem>>) attributes {dimension_semantics = [#tpu.dimension_semantics<parallel>], iteration_bounds = array<i64: 1>, scalar_prefetch = 0 : i64, scratch_operands = 0 : i64, tpu.core_type = #tpu.core_type<tc>, window_params = [{transform_indices = @transform_0, window_bounds = array<i64: 8, 32>}, {pipeline_mode = #tpu.pipeline_mode<synchronous>, transform_indices = @transform_1, window_bounds = array<i64: 32, 128>}, {pipeline_mode = #tpu.pipeline_mode<synchronous>, transform_indices = @transform_2, window_bounds = array<i64: 1, 128>}, {pipeline_mode = #tpu.pipeline_mode<synchronous>, transform_indices = @transform_3, window_bounds = array<i64: 128, 128>}, {transform_indices = @transform_4, window_bounds = array<i64: 8, 128>}]} {
    %c0 = arith.constant 0 : index
    %c0_0 = arith.constant 0 : index
    %0 = vector.load %arg1[%c0, %c0_0] : memref<8x32xf32, #tpu.memory_space<vmem>>, vector<8x32xf32>
    %c0_1 = arith.constant 0 : index
    %c0_2 = arith.constant 0 : index
    %1 = vector.load %arg2[%c0_1, %c0_2] : memref<32x128xf32, #tpu.memory_space<vmem>>, vector<32x128xf32>
    %cst = arith.constant dense<0.000000e+00> : vector<8x128xf32>
    %2 = tpu.matmul %0, %1, %cst {dimension_numbers = #tpu.dot_dimension_numbers<[1], [0], [0], [1], [0, 0, 1, 1], [], []>} : vector<8x32xf32>, vector<32x128xf32>, vector<8x128xf32> -> vector<8x128xf32>
    %c0_3 = arith.constant 0 : index
    %c0_4 = arith.constant 0 : index
    %3 = vector.load %arg3[%c0_3, %c0_4] : memref<1x128xf32, #tpu.memory_space<vmem>>, vector<1x128xf32>
    %4 = vector.broadcast %3 : vector<1x128xf32> to vector<8x128xf32>
    %5 = arith.addf %2, %4 : vector<8x128xf32>
    %cst_5 = arith.constant 0.000000e+00 : f32
    %6 = vector.broadcast %cst_5 : f32 to vector<8x128xf32>
    %7 = arith.maximumf %5, %6 : vector<8x128xf32>
    %c0_6 = arith.constant 0 : index
    %c0_7 = arith.constant 0 : index
    %8 = vector.load %arg4[%c0_6, %c0_7] : memref<128x128xf32, #tpu.memory_space<vmem>>, vector<128x128xf32>
    %cst_8 = arith.constant dense<0.000000e+00> : vector<8x128xf32>
    %9 = tpu.matmul %7, %8, %cst_8 {dimension_numbers = #tpu.dot_dimension_numbers<[1], [0], [0], [1], [0, 0, 1, 1], [], []>} : vector<8x128xf32>, vector<128x128xf32>, vector<8x128xf32> -> vector<8x128xf32>
    %c8_i32 = arith.constant 8 : i32
    %10 = arith.muli %arg0, %c8_i32 : i32
    %11 = tpu.iota {dimensions = array<i32: 0>} : vector<8x1xi32>
    %12 = vector.broadcast %10 : i32 to vector<8x1xi32>
    %13 = arith.addi %12, %11 : vector<8x1xi32>
    %c8_i32_9 = arith.constant 8 : i32
    %14 = vector.broadcast %c8_i32_9 : i32 to vector<8x1xi32>
    %15 = arith.cmpi slt, %13, %14 : vector<8x1xi32>
    %cst_10 = arith.constant 0.000000e+00 : f32
    %16 = vector.shape_cast %15 : vector<8x1xi1> to vector<8x1xi1>
    %17 = vector.broadcast %16 : vector<8x1xi1> to vector<8x128xi1>
    %18 = vector.broadcast %cst_10 : f32 to vector<8x128xf32>
    %19 = arith.select %17, %9, %18 : vector<8x128xi1>, vector<8x128xf32>
    %cst_11 = arith.constant dense<0.000000e+00> : vector<128xf32>
    %20 = vector.multi_reduction <add>, %19, %cst_11 [0] : vector<8x128xf32> to vector<128xf32>
    %21 = vector.shape_cast %20 : vector<128xf32> to vector<1x128xf32>
    %22 = arith.mulf %19, %19 : vector<8x128xf32>
    %cst_12 = arith.constant dense<0.000000e+00> : vector<128xf32>
    %23 = vector.multi_reduction <add>, %22, %cst_12 [0] : vector<8x128xf32> to vector<128xf32>
    %24 = vector.shape_cast %23 : vector<128xf32> to vector<1x128xf32>
    %25 = tpu.concatenate %21, %24 in 0 : vector<1x128xf32>, vector<1x128xf32> -> vector<2x128xf32>
    %c0_13 = arith.constant 0 : index
    %c0_14 = arith.constant 0 : index
    %26 = vector.load %arg5[%c0_13, %c0_14] : memref<8x128xf32, #tpu.memory_space<vmem>>, vector<2x128xf32>
    tpu.vector_store %arg5[%c0_13, %c0_14], %25 {strides = array<i32>} : memref<8x128xf32, #tpu.memory_space<vmem>>, vector<2x128xf32>,
    return
  }
  func.func @transform_0(%arg0: i32) -> (i32, i32) {
    %c0_i32 = arith.constant 0 : i32
    %c0_i32_0 = arith.constant 0 : i32
    return %arg0, %c0_i32 : i32, i32
  }
  func.func @transform_1(%arg0: i32) -> (i32, i32) {
    %c0_i32 = arith.constant 0 : i32
    %c0_i32_0 = arith.constant 0 : i32
    %c0_i32_1 = arith.constant 0 : i32
    return %c0_i32, %c0_i32_0 : i32, i32
  }
  func.func @transform_2(%arg0: i32) -> (i32, i32) {
    %c0_i32 = arith.constant 0 : i32
    %c0_i32_0 = arith.constant 0 : i32
    %c0_i32_1 = arith.constant 0 : i32
    return %c0_i32, %c0_i32_0 : i32, i32
  }
  func.func @transform_3(%arg0: i32) -> (i32, i32) {
    %c0_i32 = arith.constant 0 : i32
    %c0_i32_0 = arith.constant 0 : i32
    %c0_i32_1 = arith.constant 0 : i32
    return %c0_i32, %c0_i32_0 : i32, i32
  }
  func.func @transform_4(%arg0: i32) -> (i32, i32) {
    %c0_i32 = arith.constant 0 : i32
    %c0_i32_0 = arith.constant 0 : i32
    return %arg0, %c0_i32 : i32, i32
  }
}

module attributes {stable_mosaic.version = 11 : i64} {
  func.func @_stats_kernel(%arg0: i32, %arg1: memref<8x32xf32, #tpu.memory_space<vmem>>, %arg2: memref<32x128xf32, #tpu.memory_space<vmem>>, %arg3: memref<1x128xf32, #tpu.memory_space<vmem>>, %arg4: memref<128x128xf32, #tpu.memory_space<vmem>>, %arg5: memref<8x128xf32, #tpu.memory_space<vmem>>) attributes {dimension_semantics = [#tpu.dimension_semantics<parallel>], iteration_bounds = array<i64: 1>, scalar_prefetch = 0 : i64, scratch_operands = 0 : i64, tpu.core_type = #tpu.core_type<tc>, window_params = [{transform_indices = @transform_0, window_bounds = array<i64: 8, 32>}, {pipeline_mode = #tpu.pipeline_mode<synchronous>, transform_indices = @transform_1, window_bounds = array<i64: 32, 128>}, {pipeline_mode = #tpu.pipeline_mode<synchronous>, transform_indices = @transform_2, window_bounds = array<i64: 1, 128>}, {pipeline_mode = #tpu.pipeline_mode<synchronous>, transform_indices = @transform_3, window_bounds = array<i64: 128, 128>}, {transform_indices = @transform_4, window_bounds = array<i64: 8, 128>}]} {
    %c0 = arith.constant 0 : index
    %c0_0 = arith.constant 0 : index
    %0 = vector.load %arg1[%c0, %c0_0] : memref<8x32xf32, #tpu.memory_space<vmem>>, vector<8x32xf32>
    %c0_1 = arith.constant 0 : index
    %c0_2 = arith.constant 0 : index
    %1 = vector.load %arg2[%c0_1, %c0_2] : memref<32x128xf32, #tpu.memory_space<vmem>>, vector<32x128xf32>
    %cst = arith.constant dense<0.000000e+00> : vector<8x128xf32>
    %2 = tpu.matmul %0, %1, %cst {dimension_numbers = #tpu.dot_dimension_numbers<[1], [0], [0], [1], [0, 0, 1, 1], [], []>} : vector<8x32xf32>, vector<32x128xf32>, vector<8x128xf32> -> vector<8x128xf32>
    %c0_3 = arith.constant 0 : index
    %c0_4 = arith.constant 0 : index
    %3 = vector.load %arg3[%c0_3, %c0_4] : memref<1x128xf32, #tpu.memory_space<vmem>>, vector<1x128xf32>
    %4 = vector.broadcast %3 : vector<1x128xf32> to vector<8x128xf32>
    %5 = arith.addf %2, %4 : vector<8x128xf32>
    %cst_5 = arith.constant 0.000000e+00 : f32
    %6 = vector.broadcast %cst_5 : f32 to vector<8x128xf32>
    %7 = arith.maximumf %5, %6 : vector<8x128xf32>
    %c0_6 = arith.constant 0 : index
    %c0_7 = arith.constant 0 : index
    %8 = vector.load %arg4[%c0_6, %c0_7] : memref<128x128xf32, #tpu.memory_space<vmem>>, vector<128x128xf32>
    %cst_8 = arith.constant dense<0.000000e+00> : vector<8x128xf32>
    %9 = tpu.matmul %7, %8, %cst_8 {dimension_numbers = #tpu.dot_dimension_numbers<[1], [0], [0], [1], [0, 0, 1, 1], [], []>} : vector<8x128xf32>, vector<128x128xf32>, vector<8x128xf32> -> vector<8x128xf32>
    %c8_i32 = arith.constant 8 : i32
    %10 = arith.muli %arg0, %c8_i32 : i32
    %11 = tpu.iota {dimensions = array<i32: 0>} : vector<8x1xi32>
    %12 = vector.broadcast %10 : i32 to vector<8x1xi32>
    %13 = arith.addi %12, %11 : vector<8x1xi32>
    %c8_i32_9 = arith.constant 8 : i32
    %14 = vector.broadcast %c8_i32_9 : i32 to vector<8x1xi32>
    %15 = arith.cmpi slt, %13, %14 : vector<8x1xi32>
    %cst_10 = arith.constant 0.000000e+00 : f32
    %16 = vector.shape_cast %15 : vector<8x1xi1> to vector<8x1xi1>
    %17 = vector.broadcast %16 : vector<8x1xi1> to vector<8x128xi1>
    %18 = vector.broadcast %cst_10 : f32 to vector<8x128xf32>
    %19 = arith.select %17, %9, %18 : vector<8x128xi1>, vector<8x128xf32>
    %cst_11 = arith.constant dense<0.000000e+00> : vector<128xf32>
    %20 = vector.multi_reduction <add>, %19, %cst_11 [0] : vector<8x128xf32> to vector<128xf32>
    %21 = vector.shape_cast %20 : vector<128xf32> to vector<1x128xf32>
    %22 = arith.mulf %19, %19 : vector<8x128xf32>
    %cst_12 = arith.constant dense<0.000000e+00> : vector<128xf32>
    %23 = vector.multi_reduction <add>, %22, %cst_12 [0] : vector<8x128xf32> to vector<128xf32>
    %24 = vector.shape_cast %23 : vector<128xf32> to vector<1x128xf32>
    %25 = tpu.concatenate %21, %24 in 0 : vector<1x128xf32>, vector<1x128xf32> -> vector<2x128xf32>
    %c0_13 = arith.constant 0 : index
    %c0_14 = arith.constant 0 : index
    %26 = vector.load %arg5[%c0_13, %c0_14] : memref<8x128xf32, #tpu.memory_space<vmem>>, vector<2x128xf32>
    tpu.vector_store %arg5[%c0_13, %c0_14], %25 {strides = array<i32>} : memref<8x128xf32, #tpu.memory_space<vmem>>, vector<2x128xf32>,
    return
  }
  func.func @transform_0(%arg0: i32) -> (i32, i32) {
    %c0_i32 = arith.constant 0 : i32
    %c0_i32_0 = arith.constant 0 : i32
    return %arg0, %c0_i32 : i32, i32
  }
  func.func @transform_1(%arg0: i32) -> (i32, i32) {
    %c0_i32 = arith.constant 0 : i32
    %c0_i32_0 = arith.constant 0 : i32
    %c0_i32_1 = arith.constant 0 : i32
    return %c0_i32, %c0_i32_0 : i32, i32
  }
  func.func @transform_2(%arg0: i32) -> (i32, i32) {
    %c0_i32 = arith.constant 0 : i32
    %c0_i32_0 = arith.constant 0 : i32
    %c0_i32_1 = arith.constant 0 : i32
    return %c0_i32, %c0_i32_0 : i32, i32
  }
  func.func @transform_3(%arg0: i32) -> (i32, i32) {
    %c0_i32 = arith.constant 0 : i32
    %c0_i32_0 = arith.constant 0 : i32
    %c0_i32_1 = arith.constant 0 : i32
    return %c0_i32, %c0_i32_0 : i32, i32
  }
  func.func @transform_4(%arg0: i32) -> (i32, i32) {
    %c0_i32 = arith.constant 0 : i32
    %c0_i32_0 = arith.constant 0 : i32
    return %arg0, %c0_i32 : i32, i32
  }
}

</mosaic_0001>

<llo_original>
// kernel: tpu_custom_call.1
$region0: #{tpu_custom_call.1}
  #allocation0 [shape = 'u32[]', space=smem, size = 0x4, offset = 0x4, fixed_abs, tag = 'smem constant byte address 0x4 - core index']
  #allocation1 [shape = 'u32[144,128]{1,0:T(1,128)}', space=vmem, size = 0x12000, scoped, tag = 'internal scratch']
  %s0 = inlined_call_operand.hbm [shape: f32[8,32], index: 0, kind: input, shape index: {}]
  %s1 = inlined_call_operand.hbm [shape: f32[32,128], index: 1, kind: input, shape index: {}]
  %s2 = inlined_call_operand.vmem [shape: f32[1,128], index: 2, kind: input, shape index: {}]
  %s3 = inlined_call_operand.hbm [shape: f32[128,128], index: 3, kind: input, shape index: {}]
  %s4 = inlined_call_operand.hbm [shape: f32[8,128], index: 4, kind: output, shape index: {}]
  %s5 = sld [smem:[#allocation0]]
  $region38: #{tpu_custom_call.1} parent=0
    _
  %s7 = ssub.s32 1, %s5
  %s8 = scalar_select 0, %s7, %s5
  $region1: #{tpu_custom_call.1} parent=0
    #allocation2 [shape = 'u8[4096]{0}', space=vmem, size = 0x1000, scoped, tag = 'input window, operand 0, single buffered']
    #allocation3 [shape = 's32[1]{0}', space=sflag, size = 0x4, scoped, tag = 'scoped memory for tpu_custom_call.1']
    #allocation4 [shape = 's32[1]{0}', space=sflag, size = 0x4, scoped, tag = 'scoped memory for tpu_custom_call.1']
    #allocation5 [shape = 'u8[16384]{0}', space=vmem, size = 0x4000, scoped, tag = 'input window, operand 1, single buffered']
    #allocation6 [shape = 's32[1]{0}', space=sflag, size = 0x4, scoped, tag = 'scoped memory for tpu_custom_call.1']
    #allocation7 [shape = 'u8[65536]{0}', space=vmem, size = 0x10000, scoped, tag = 'input window, operand 3, single buffered']
    #allocation8 [shape = 'u8[4096]{0}', space=vmem, size = 0x1000, scoped, tag = 'output window, operand 0, single buffered']
    %9 = vsyncpa [#allocation3], 0
    %10 = vsyncpa [#allocation6], 0
    %11 = vsyncpa [#allocation4], 0
    // Predicated region
    $region2: #{tpu_custom_call.1} parent=1 // pred_check
      _
    $region3: #{tpu_custom_call.1} parent=1 // pred_check_branch
      %13 = sbr.rel (0) target = $region5
    $region4: #{tpu_custom_call.1} parent=1 // pred_region
      %s15 = ssub.s32 128, 128
      %16 = vsyncadd [#allocation3], %s15
      %s18 = sshll.u32 [#allocation2], 4
      %s19 = int_to_ptr.vmem [resolvable:$true] %s18
      %21 = dma.hbm_to_vmem [thread:$0]  %s0, 128, %s19, [#allocation3]
    $region5: #{tpu_custom_call.1} parent=1 // pred_fallthru
      _
    // Predicated region
    $region6: #{tpu_custom_call.1} parent=1 // pred_check
      _
    $region7: #{tpu_custom_call.1} parent=1 // pred_check_branch
      %23 = sbr.rel (0) target = $region9
    $region8: #{tpu_custom_call.1} parent=1 // pred_region
      %s25 = ssub.s32 512, 512
      %26 = vsyncadd [#allocation6], %s25
      %s27 = sshll.u32 [#allocation5], 4
      %s28 = int_to_ptr.vmem [resolvable:$true] %s27
      %33 = dma.hbm_to_vmem [thread:$0]  %s1, 512, %s28, [#allocation6], 128, 128, 8
    $region9: #{tpu_custom_call.1} parent=1 // pred_fallthru
      _
    // Predicated region
    $region10: #{tpu_custom_call.1} parent=1 // pred_check
      _
    $region11: #{tpu_custom_call.1} parent=1 // pred_check_branch
      %35 = sbr.rel (0) target = $region13
    $region12: #{tpu_custom_call.1} parent=1 // pred_region
      _
    $region13: #{tpu_custom_call.1} parent=1 // pred_fallthru
      _
    // Predicated region
    $region14: #{tpu_custom_call.1} parent=1 // pred_check
      _
    $region15: #{tpu_custom_call.1} parent=1 // pred_check_branch
      %37 = sbr.rel (0) target = $region17
    $region16: #{tpu_custom_call.1} parent=1 // pred_region
      %s39 = ssub.s32 2048, 2048
      %40 = vsyncadd [#allocation6], %s39
      %s41 = sshll.u32 [#allocation7], 4
      %s42 = int_to_ptr.vmem [resolvable:$true] %s41
      %47 = dma.hbm_to_vmem [thread:$0]  %s3, 2048, %s42, [#allocation6], 128, 128, 8
    $region17: #{tpu_custom_call.1} parent=1 // pred_fallthru
      _
    // Predicated region
    $region18: #{tpu_custom_call.1} parent=1 // pred_check
      _
    $region19: #{tpu_custom_call.1} parent=1 // pred_check_branch
      %49 = sbr.rel (0) target = $region21
    $region20: #{tpu_custom_call.1} parent=1 // pred_region
      %50 = dma.done [#allocation3], 128
    $region21: #{tpu_custom_call.1} parent=1 // pred_fallthru
      _
    // Predicated region
    $region22: #{tpu_custom_call.1} parent=1 // pred_check
      _
    $region23: #{tpu_custom_call.1} parent=1 // pred_check_branch
      %52 = sbr.rel (0) target = $region25
    $region24: #{tpu_custom_call.1} parent=1 // pred_region
      %53 = dma.done [#allocation6], 512
    $region25: #{tpu_custom_call.1} parent=1 // pred_fallthru
      _
    // Predicated region
    $region26: #{tpu_custom_call.1} parent=1 // pred_check
      _
    $region27: #{tpu_custom_call.1} parent=1 // pred_check_branch
      %55 = sbr.rel (0) target = $region29
    $region28: #{tpu_custom_call.1} parent=1 // pred_region
      %56 = dma.done [#allocation6], 2048
    $region29: #{tpu_custom_call.1} parent=1 // pred_fallthru
      _
    %v57 = vld [vmem:[#allocation2] sm:$0xff]
    %v58 = vld [vmem:[#allocation5] sm:$0xff]
    %v59 = vld [vmem:[#allocation5 + $0x8] sm:$0xff]
    %v60 = vld [vmem:[#allocation5 + $0x10] sm:$0xff]
    %v61 = vld [vmem:[#allocation5 + $0x18] sm:$0xff]
    %v62 = vld [vmem:[%s2] sm:$0x1]
    %v64 = vlaneseq
    %v65 = vshrl.u32 %v64, 7
    %v66 = vsub.s32 0, %v65
    %v67 = vrot.slane %v62, %v66
    %vm69 = vcmask 261120
    %v71 = vsel %vm69, %v57, 0
    %73 = vmatprep.subr.mxu0 0.0
    %74 = vmatpush1.msra.mxu0 0.0
    %75 = vmatprep.subr.mxu0 0.0
    %76 = vmatpush1.msra.mxu0 0.0
    %77 = vmatprep.subr.mxu0 0.0
    %78 = vmatpush1.msra.mxu0 0.0
    %79 = vmatprep.subr.mxu0 0.0
    %80 = vmatpush1.msra.mxu0 0.0
    %81 = vmatprep.subr.mxu0 0.0
    %82 = vmatpush1.msra.mxu0 0.0
    %83 = vmatprep.subr.mxu0 0.0
    %84 = vmatpush1.msra.mxu0 0.0
    %85 = vmatprep.subr.mxu0 0.0
    %86 = vmatpush1.msra.mxu0 0.0
    %87 = vmatprep.subr.mxu0 0.0
    %88 = vmatpush1.msra.mxu0 0.0
    %89 = vmatprep.subr.mxu0 0.0
    %90 = vmatpush1.msra.mxu0 0.0
    %91 = vmatprep.subr.mxu0 0.0
    %92 = vmatpush1.msra.mxu0 0.0
    %93 = vmatprep.subr.mxu0 0.0
    %94 = vmatpush1.msra.mxu0 0.0
    %95 = vmatprep.subr.mxu0 0.0
    %96 = vmatpush1.msra.mxu0 0.0
    %97 = vmatprep.subr.mxu0 0.0
    %98 = vmatpush1.msra.mxu0 %v61
    %99 = vmatprep.subr.mxu0 0.0
    %100 = vmatpush1.msra.mxu0 %v60
    %101 = vmatprep.subr.mxu0 0.0
    %102 = vmatpush1.msra.mxu0 %v59
    %103 = vmatprep.subr.mxu0 0.0
    %104 = vmatpush1.msra.mxu0 %v58
    %105 = vmatprep.subr.mxu0 0.0
    %106 = vmatpush2.msra.mxu0 0.0
    %107 = vmatprep.subr.mxu0 0.0
    %108 = vmatpush2.msra.mxu0 0.0
    %109 = vmatprep.subr.mxu0 0.0
    %110 = vmatpush2.msra.mxu0 0.0
    %111 = vmatprep.subr.mxu0 0.0
    %112 = vmatpush2.msra.mxu0 0.0
    %113 = vmatprep.subr.mxu0 0.0
    %114 = vmatpush2.msra.mxu0 0.0
    %115 = vmatprep.subr.mxu0 0.0
    %116 = vmatpush2.msra.mxu0 0.0
    %117 = vmatprep.subr.mxu0 0.0
    %118 = vmatpush2.msra.mxu0 0.0
    %119 = vmatprep.subr.mxu0 0.0
    %120 = vmatpush2.msra.mxu0 0.0
    %121 = vmatprep.subr.mxu0 0.0
    %122 = vmatpush2.msra.mxu0 0.0
    %123 = vmatprep.subr.mxu0 0.0
    %124 = vmatpush2.msra.mxu0 0.0
    %125 = vmatprep.subr.mxu0 0.0
    %126 = vmatpush2.msra.mxu0 0.0
    %127 = vmatprep.subr.mxu0 0.0
    %128 = vmatpush2.msra.mxu0 0.0
    %129 = vmatprep.subr.mxu0 0.0
    %130 = vmatpush2.msra.mxu0 0.0
    %131 = vmatprep.subr.mxu0 0.0
    %132 = vmatpush2.msra.mxu0 0.0
    %133 = vmatprep.subr.mxu0 0.0
    %134 = vmatpush2.msra.mxu0 0.0
    %135 = vmatprep.subr.mxu0 0.0
    %136 = vmatpush2.msra.mxu0 0.0
    %137 = vmatprep.mubr.f32.mxu0 0.0
    %138 = vmatmul.mubr.f32.gmra.mxu0 %v71
    %v139 = vpop.f32.mrf.mxu0
    %v140 = vadd.f32 %v67, %v139
    %v141 = vpop.f32.mrf.mxu0
    %142 = vdwg.mxu0
    %v143 = vmax.f32 %v140, 0.0
    %v144 = vld [vmem:[#allocation7] sm:$0xff]
    %v145 = vld [vmem:[#allocation7 + $0x8] sm:$0xff]
    %v146 = vld [vmem:[#allocation7 + $0x10] sm:$0xff]
    %v147 = vld [vmem:[#allocation7 + $0x18] sm:$0xff]
    %v148 = vld [vmem:[#allocation7 + $0x20] sm:$0xff]
    %v149 = vld [vmem:[#allocation7 + $0x28] sm:$0xff]
    %v150 = vld [vmem:[#allocation7 + $0x30] sm:$0xff]
    %v151 = vld [vmem:[#allocation7 + $0x38] sm:$0xff]
    %v152 = vld [vmem:[#allocation7 + $0x40] sm:$0xff]
    %v153 = vld [vmem:[#allocation7 + $0x48] sm:$0xff]
    %v154 = vld [vmem:[#allocation7 + $0x50] sm:$0xff]
    %v155 = vld [vmem:[#allocation7 + $0x58] sm:$0xff]
    %v156 = vld [vmem:[#allocation7 + $0x60] sm:$0xff]
    %v157 = vld [vmem:[#allocation7 + $0x68] sm:$0xff]
    %v158 = vld [vmem:[#allocation7 + $0x70] sm:$0xff]
    %v159 = vld [vmem:[#allocation7 + $0x78] sm:$0xff]
    %160 = vmatprep.subr.mxu0 0.0
    %161 = vmatpush1.msra.mxu0 %v159
    %162 = vmatprep.subr.mxu0 0.0
    %163 = vmatpush1.msra.mxu0 %v158
    %164 = vmatprep.subr.mxu0 0.0
    %165 = vmatpush1.msra.mxu0 %v157
    %166 = vmatprep.subr.mxu0 0.0
    %167 = vmatpush1.msra.mxu0 %v156
    %168 = vmatprep.subr.mxu0 0.0
    %169 = vmatpush1.msra.mxu0 %v155
    %170 = vmatprep.subr.mxu0 0.0
    %171 = vmatpush1.msra.mxu0 %v154
    %172 = vmatprep.subr.mxu0 0.0
    %173 = vmatpush1.msra.mxu0 %v153
    %174 = vmatprep.subr.mxu0 0.0
    %175 = vmatpush1.msra.mxu0 %v152
    %176 = vmatprep.subr.mxu0 0.0
    %177 = vmatpush1.msra.mxu0 %v151
    %178 = vmatprep.subr.mxu0 0.0
    %179 = vmatpush1.msra.mxu0 %v150
    %180 = vmatprep.subr.mxu0 0.0
    %181 = vmatpush1.msra.mxu0 %v149
    %182 = vmatprep.subr.mxu0 0.0
    %183 = vmatpush1.msra.mxu0 %v148
    %184 = vmatprep.subr.mxu0 0.0
    %185 = vmatpush1.msra.mxu0 %v147
    %186 = vmatprep.subr.mxu0 0.0
    %187 = vmatpush1.msra.mxu0 %v146
    %188 = vmatprep.subr.mxu0 0.0
    %189 = vmatpush1.msra.mxu0 %v145
    %190 = vmatprep.subr.mxu0 0.0
    %191 = vmatpush1.msra.mxu0 %v144
    %192 = vmatprep.subr.mxu0 0.0
    %193 = vmatpush2.msra.mxu0 0.0
    %194 = vmatprep.subr.mxu0 0.0
    %195 = vmatpush2.msra.mxu0 0.0
    %196 = vmatprep.subr.mxu0 0.0
    %197 = vmatpush2.msra.mxu0 0.0
    %198 = vmatprep.subr.mxu0 0.0
    %199 = vmatpush2.msra.mxu0 0.0
    %200 = vmatprep.subr.mxu0 0.0
    %201 = vmatpush2.msra.mxu0 0.0
    %202 = vmatprep.subr.mxu0 0.0
    %203 = vmatpush2.msra.mxu0 0.0
    %204 = vmatprep.subr.mxu0 0.0
    %205 = vmatpush2.msra.mxu0 0.0
    %206 = vmatprep.subr.mxu0 0.0
    %207 = vmatpush2.msra.mxu0 0.0
    %208 = vmatprep.subr.mxu0 0.0
    %209 = vmatpush2.msra.mxu0 0.0
    %210 = vmatprep.subr.mxu0 0.0
    %211 = vmatpush2.msra.mxu0 0.0
    %212 = vmatprep.subr.mxu0 0.0
    %213 = vmatpush2.msra.mxu0 0.0
    %214 = vmatprep.subr.mxu0 0.0
    %215 = vmatpush2.msra.mxu0 0.0
    %216 = vmatprep.subr.mxu0 0.0
    %217 = vmatpush2.msra.mxu0 0.0
    %218 = vmatprep.subr.mxu0 0.0
    %219 = vmatpush2.msra.mxu0 0.0
    %220 = vmatprep.subr.mxu0 0.0
    %221 = vmatpush2.msra.mxu0 0.0
    %222 = vmatprep.subr.mxu0 0.0
    %223 = vmatpush2.msra.mxu0 0.0
    %224 = vmatprep.mubr.f32.mxu0 0.0
    %225 = vmatmul.mubr.f32.gmra.mxu0 %v143
    %v226 = vpop.f32.mrf.mxu0
    %v227 = vadd.f32 0.0, %v226
    %v228 = vpop.f32.mrf.mxu0
    %229 = vdwg.mxu0
    %s230 = smul.u32 0, 8
    %v231 = vlaneseq
    %v232 = vshrl.u32 %v231, 7
    %v233 = vstv %s230
    %v234 = vadd.s32 %v233, %v232
    %vm235 = vcmp.lt.s32.totalorder %v234, 8
    %v236 = vsel %vm235, 1, 0
    %vm237 = vcmp.eq.s32.totalorder %v236, 1
    %v238 = vsel %vm237, %v227, 0.0
    %v239 = vrot.slane %v238, 4
    %v240 = vadd.f32 %v238, %v239
    %v241 = vrot.slane %v240, 2
    %v242 = vadd.f32 %v240, %v241
    %v243 = vrot.slane %v242, 1
    %v244 = vadd.f32 %v242, %v243
    %v245 = vmul.f32 %v238, %v238
    %v246 = vrot.slane %v245, 4
    %v247 = vadd.f32 %v245, %v246
    %v248 = vrot.slane %v247, 2
    %v249 = vadd.f32 %v247, %v248
    %v250 = vrot.slane %v249, 1
    %v251 = vadd.f32 %v249, %v250
    %vm252 = vcmask 1040384
    %v253 = vsel %vm252, %v244, %v251
    %254 = vst [vmem:[#allocation8] sm:$0x3] %v253
    // Predicated region
    $region30: #{tpu_custom_call.1} parent=1 // pred_check
      _
    $region31: #{tpu_custom_call.1} parent=1 // pred_check_branch
      %256 = sbr.rel (0) target = $region33
    $region32: #{tpu_custom_call.1} parent=1 // pred_region
      %s258 = ssub.s32 128, 128
      %259 = vsyncadd [#allocation4], %s258
      %s261 = sshll.u32 [#allocation8], 4
      %s262 = int_to_ptr.vmem [resolvable:$true] %s261
      %264 = dma.vmem_to_hbm [thread:$0]  %s262, 128, %s4, [#allocation4]
    $region33: #{tpu_custom_call.1} parent=1 // pred_fallthru
      _
    // Predicated region
    $region34: #{tpu_custom_call.1} parent=1 // pred_check
      _
    $region35: #{tpu_custom_call.1} parent=1 // pred_check_branch
      %266 = sbr.rel (0) target = $region37
    $region36: #{tpu_custom_call.1} parent=1 // pred_region
      %267 = dma.done [#allocation4], 128
    $region37: #{tpu_custom_call.1} parent=1 // pred_fallthru
      _
    %268 = vsyncpa [#allocation3], 1
    %269 = vsyncpa [#allocation6], 1
    %270 = vsyncpa [#allocation4], 1

// kernel: tpu_custom_call.1
$region0: #{tpu_custom_call.1}
  #allocation0 [shape = 'u32[]', space=smem, size = 0x4, offset = 0x4, fixed_abs, tag = 'smem constant byte address 0x4 - core index']
  #allocation1 [shape = 'u32[144,128]{1,0:T(1,128)}', space=vmem, size = 0x12000, scoped, tag = 'internal scratch']
  %s0 = inlined_call_operand.hbm [shape: f32[8,32], index: 0, kind: input, shape index: {}]
  %s1 = inlined_call_operand.hbm [shape: f32[32,128], index: 1, kind: input, shape index: {}]
  %s2 = inlined_call_operand.vmem [shape: f32[1,128], index: 2, kind: input, shape index: {}]
  %s3 = inlined_call_operand.hbm [shape: f32[128,128], index: 3, kind: input, shape index: {}]
  %s4 = inlined_call_operand.hbm [shape: f32[8,128], index: 4, kind: output, shape index: {}]
  %s5 = sld [smem:[#allocation0]]
  $region38: #{tpu_custom_call.1} parent=0
    _
  %s7 = ssub.s32 1, %s5
  %s8 = scalar_select 0, %s7, %s5
  $region1: #{tpu_custom_call.1} parent=0
    #allocation2 [shape = 'u8[4096]{0}', space=vmem, size = 0x1000, scoped, tag = 'input window, operand 0, single buffered']
    #allocation3 [shape = 's32[1]{0}', space=sflag, size = 0x4, scoped, tag = 'scoped memory for tpu_custom_call.1']
    #allocation4 [shape = 's32[1]{0}', space=sflag, size = 0x4, scoped, tag = 'scoped memory for tpu_custom_call.1']
    #allocation5 [shape = 'u8[16384]{0}', space=vmem, size = 0x4000, scoped, tag = 'input window, operand 1, single buffered']
    #allocation6 [shape = 's32[1]{0}', space=sflag, size = 0x4, scoped, tag = 'scoped memory for tpu_custom_call.1']
    #allocation7 [shape = 'u8[65536]{0}', space=vmem, size = 0x10000, scoped, tag = 'input window, operand 3, single buffered']
    #allocation8 [shape = 'u8[4096]{0}', space=vmem, size = 0x1000, scoped, tag = 'output window, operand 0, single buffered']
    %9 = vsyncpa [#allocation3], 0
    %10 = vsyncpa [#allocation6], 0
    %11 = vsyncpa [#allocation4], 0
    // Predicated region
    $region2: #{tpu_custom_call.1} parent=1 // pred_check
      _
    $region3: #{tpu_custom_call.1} parent=1 // pred_check_branch
      %13 = sbr.rel (0) target = $region5
    $region4: #{tpu_custom_call.1} parent=1 // pred_region
      %s15 = ssub.s32 128, 128
      %16 = vsyncadd [#allocation3], %s15
      %s18 = sshll.u32 [#allocation2], 4
      %s19 = int_to_ptr.vmem [resolvable:$true] %s18
      %21 = dma.hbm_to_vmem [thread:$0]  %s0, 128, %s19, [#allocation3]
    $region5: #{tpu_custom_call.1} parent=1 // pred_fallthru
      _
    // Predicated region
    $region6: #{tpu_custom_call.1} parent=1 // pred_check
      _
    $region7: #{tpu_custom_call.1} parent=1 // pred_check_branch
      %23 = sbr.rel (0) target = $region9
    $region8: #{tpu_custom_call.1} parent=1 // pred_region
      %s25 = ssub.s32 512, 512
      %26 = vsyncadd [#allocation6], %s25
      %s27 = sshll.u32 [#allocation5], 4
      %s28 = int_to_ptr.vmem [resolvable:$true] %s27
      %33 = dma.hbm_to_vmem [thread:$0]  %s1, 512, %s28, [#allocation6], 128, 128, 8
    $region9: #{tpu_custom_call.1} parent=1 // pred_fallthru
      _
    // Predicated region
    $region10: #{tpu_custom_call.1} parent=1 // pred_check
      _
    $region11: #{tpu_custom_call.1} parent=1 // pred_check_branch
      %35 = sbr.rel (0) target = $region13
    $region12: #{tpu_custom_call.1} parent=1 // pred_region
      _
    $region13: #{tpu_custom_call.1} parent=1 // pred_fallthru
      _
    // Predicated region
    $region14: #{tpu_custom_call.1} parent=1 // pred_check
      _
    $region15: #{tpu_custom_call.1} parent=1 // pred_check_branch
      %37 = sbr.rel (0) target = $region17
    $region16: #{tpu_custom_call.1} parent=1 // pred_region
      %s39 = ssub.s32 2048, 2048
      %40 = vsyncadd [#allocation6], %s39
      %s41 = sshll.u32 [#allocation7], 4
      %s42 = int_to_ptr.vmem [resolvable:$true] %s41
      %47 = dma.hbm_to_vmem [thread:$0]  %s3, 2048, %s42, [#allocation6], 128, 128, 8
    $region17: #{tpu_custom_call.1} parent=1 // pred_fallthru
      _
    // Predicated region
    $region18: #{tpu_custom_call.1} parent=1 // pred_check
      _
    $region19: #{tpu_custom_call.1} parent=1 // pred_check_branch
      %49 = sbr.rel (0) target = $region21
    $region20: #{tpu_custom_call.1} parent=1 // pred_region
      %50 = dma.done [#allocation3], 128
    $region21: #{tpu_custom_call.1} parent=1 // pred_fallthru
      _
    // Predicated region
    $region22: #{tpu_custom_call.1} parent=1 // pred_check
      _
    $region23: #{tpu_custom_call.1} parent=1 // pred_check_branch
      %52 = sbr.rel (0) target = $region25
    $region24: #{tpu_custom_call.1} parent=1 // pred_region
      %53 = dma.done [#allocation6], 512
    $region25: #{tpu_custom_call.1} parent=1 // pred_fallthru
      _
    // Predicated region
    $region26: #{tpu_custom_call.1} parent=1 // pred_check
      _
    $region27: #{tpu_custom_call.1} parent=1 // pred_check_branch
      %55 = sbr.rel (0) target = $region29
    $region28: #{tpu_custom_call.1} parent=1 // pred_region
      %56 = dma.done [#allocation6], 2048
    $region29: #{tpu_custom_call.1} parent=1 // pred_fallthru
      _
    %v57 = vld [vmem:[#allocation2] sm:$0xff]
    %v58 = vld [vmem:[#allocation5] sm:$0xff]
    %v59 = vld [vmem:[#allocation5 + $0x8] sm:$0xff]
    %v60 = vld [vmem:[#allocation5 + $0x10] sm:$0xff]
    %v61 = vld [vmem:[#allocation5 + $0x18] sm:$0xff]
    %v62 = vld [vmem:[%s2] sm:$0x1]
    %v64 = vlaneseq
    %v65 = vshrl.u32 %v64, 7
    %v66 = vsub.s32 0, %v65
    %v67 = vrot.slane %v62, %v66
    %vm69 = vcmask 261120
    %v71 = vsel %vm69, %v57, 0
    %73 = vmatprep.subr.mxu0 0.0
    %74 = vmatpush1.msra.mxu0 0.0
    %75 = vmatprep.subr.mxu0 0.0
    %76 = vmatpush1.msra.mxu0 0.0
    %77 = vmatprep.subr.mxu0 0.0
    %78 = vmatpush1.msra.mxu0 0.0
    %79 = vmatprep.subr.mxu0 0.0
    %80 = vmatpush1.msra.mxu0 0.0
    %81 = vmatprep.subr.mxu0 0.0
    %82 = vmatpush1.msra.mxu0 0.0
    %83 = vmatprep.subr.mxu0 0.0
    %84 = vmatpush1.msra.mxu0 0.0
    %85 = vmatprep.subr.mxu0 0.0
    %86 = vmatpush1.msra.mxu0 0.0
    %87 = vmatprep.subr.mxu0 0.0
    %88 = vmatpush1.msra.mxu0 0.0
    %89 = vmatprep.subr.mxu0 0.0
    %90 = vmatpush1.msra.mxu0 0.0
    %91 = vmatprep.subr.mxu0 0.0
    %92 = vmatpush1.msra.mxu0 0.0
    %93 = vmatprep.subr.mxu0 0.0
    %94 = vmatpush1.msra.mxu0 0.0
    %95 = vmatprep.subr.mxu0 0.0
    %96 = vmatpush1.msra.mxu0 0.0
    %97 = vmatprep.subr.mxu0 0.0
    %98 = vmatpush1.msra.mxu0 %v61
    %99 = vmatprep.subr.mxu0 0.0
    %100 = vmatpush1.msra.mxu0 %v60
    %101 = vmatprep.subr.mxu0 0.0
    %102 = vmatpush1.msra.mxu0 %v59
    %103 = vmatprep.subr.mxu0 0.0
    %104 = vmatpush1.msra.mxu0 %v58
    %105 = vmatprep.subr.mxu0 0.0
    %106 = vmatpush2.msra.mxu0 0.0
    %107 = vmatprep.subr.mxu0 0.0
    %108 = vmatpush2.msra.mxu0 0.0
    %109 = vmatprep.subr.mxu0 0.0
    %110 = vmatpush2.msra.mxu0 0.0
    %111 = vmatprep.subr.mxu0 0.0
    %112 = vmatpush2.msra.mxu0 0.0
    %113 = vmatprep.subr.mxu0 0.0
    %114 = vmatpush2.msra.mxu0 0.0
    %115 = vmatprep.subr.mxu0 0.0
    %116 = vmatpush2.msra.mxu0 0.0
    %117 = vmatprep.subr.mxu0 0.0
    %118 = vmatpush2.msra.mxu0 0.0
    %119 = vmatprep.subr.mxu0 0.0
    %120 = vmatpush2.msra.mxu0 0.0
    %121 = vmatprep.subr.mxu0 0.0
    %122 = vmatpush2.msra.mxu0 0.0
    %123 = vmatprep.subr.mxu0 0.0
    %124 = vmatpush2.msra.mxu0 0.0
    %125 = vmatprep.subr.mxu0 0.0
    %126 = vmatpush2.msra.mxu0 0.0
    %127 = vmatprep.subr.mxu0 0.0
    %128 = vmatpush2.msra.mxu0 0.0
    %129 = vmatprep.subr.mxu0 0.0
    %130 = vmatpush2.msra.mxu0 0.0
    %131 = vmatprep.subr.mxu0 0.0
    %132 = vmatpush2.msra.mxu0 0.0
    %133 = vmatprep.subr.mxu0 0.0
    %134 = vmatpush2.msra.mxu0 0.0
    %135 = vmatprep.subr.mxu0 0.0
    %136 = vmatpush2.msra.mxu0 0.0
    %137 = vmatprep.mubr.f32.mxu0 0.0
    %138 = vmatmul.mubr.f32.gmra.mxu0 %v71
    %v139 = vpop.f32.mrf.mxu0
    %v140 = vadd.f32 %v67, %v139
    %v141 = vpop.f32.mrf.mxu0
    %142 = vdwg.mxu0
    %v143 = vmax.f32 %v140, 0.0
    %v144 = vld [vmem:[#allocation7] sm:$0xff]
    %v145 = vld [vmem:[#allocation7 + $0x8] sm:$0xff]
    %v146 = vld [vmem:[#allocation7 + $0x10] sm:$0xff]
    %v147 = vld [vmem:[#allocation7 + $0x18] sm:$0xff]
    %v148 = vld [vmem:[#allocation7 + $0x20] sm:$0xff]
    %v149 = vld [vmem:[#allocation7 + $0x28] sm:$0xff]
    %v150 = vld [vmem:[#allocation7 + $0x30] sm:$0xff]
    %v151 = vld [vmem:[#allocation7 + $0x38] sm:$0xff]
    %v152 = vld [vmem:[#allocation7 + $0x40] sm:$0xff]
    %v153 = vld [vmem:[#allocation7 + $0x48] sm:$0xff]
    %v154 = vld [vmem:[#allocation7 + $0x50] sm:$0xff]
    %v155 = vld [vmem:[#allocation7 + $0x58] sm:$0xff]
    %v156 = vld [vmem:[#allocation7 + $0x60] sm:$0xff]
    %v157 = vld [vmem:[#allocation7 + $0x68] sm:$0xff]
    %v158 = vld [vmem:[#allocation7 + $0x70] sm:$0xff]
    %v159 = vld [vmem:[#allocation7 + $0x78] sm:$0xff]
    %160 = vmatprep.subr.mxu0 0.0
    %161 = vmatpush1.msra.mxu0 %v159
    %162 = vmatprep.subr.mxu0 0.0
    %163 = vmatpush1.msra.mxu0 %v158
    %164 = vmatprep.subr.mxu0 0.0
    %165 = vmatpush1.msra.mxu0 %v157
    %166 = vmatprep.subr.mxu0 0.0
    %167 = vmatpush1.msra.mxu0 %v156
    %168 = vmatprep.subr.mxu0 0.0
    %169 = vmatpush1.msra.mxu0 %v155
    %170 = vmatprep.subr.mxu0 0.0
    %171 = vmatpush1.msra.mxu0 %v154
    %172 = vmatprep.subr.mxu0 0.0
    %173 = vmatpush1.msra.mxu0 %v153
    %174 = vmatprep.subr.mxu0 0.0
    %175 = vmatpush1.msra.mxu0 %v152
    %176 = vmatprep.subr.mxu0 0.0
    %177 = vmatpush1.msra.mxu0 %v151
    %178 = vmatprep.subr.mxu0 0.0
    %179 = vmatpush1.msra.mxu0 %v150
    %180 = vmatprep.subr.mxu0 0.0
    %181 = vmatpush1.msra.mxu0 %v149
    %182 = vmatprep.subr.mxu0 0.0
    %183 = vmatpush1.msra.mxu0 %v148
    %184 = vmatprep.subr.mxu0 0.0
    %185 = vmatpush1.msra.mxu0 %v147
    %186 = vmatprep.subr.mxu0 0.0
    %187 = vmatpush1.msra.mxu0 %v146
    %188 = vmatprep.subr.mxu0 0.0
    %189 = vmatpush1.msra.mxu0 %v145
    %190 = vmatprep.subr.mxu0 0.0
    %191 = vmatpush1.msra.mxu0 %v144
    %192 = vmatprep.subr.mxu0 0.0
    %193 = vmatpush2.msra.mxu0 0.0
    %194 = vmatprep.subr.mxu0 0.0
    %195 = vmatpush2.msra.mxu0 0.0
    %196 = vmatprep.subr.mxu0 0.0
    %197 = vmatpush2.msra.mxu0 0.0
    %198 = vmatprep.subr.mxu0 0.0
    %199 = vmatpush2.msra.mxu0 0.0
    %200 = vmatprep.subr.mxu0 0.0
    %201 = vmatpush2.msra.mxu0 0.0
    %202 = vmatprep.subr.mxu0 0.0
    %203 = vmatpush2.msra.mxu0 0.0
    %204 = vmatprep.subr.mxu0 0.0
    %205 = vmatpush2.msra.mxu0 0.0
    %206 = vmatprep.subr.mxu0 0.0
    %207 = vmatpush2.msra.mxu0 0.0
    %208 = vmatprep.subr.mxu0 0.0
    %209 = vmatpush2.msra.mxu0 0.0
    %210 = vmatprep.subr.mxu0 0.0
    %211 = vmatpush2.msra.mxu0 0.0
    %212 = vmatprep.subr.mxu0 0.0
    %213 = vmatpush2.msra.mxu0 0.0
    %214 = vmatprep.subr.mxu0 0.0
    %215 = vmatpush2.msra.mxu0 0.0
    %216 = vmatprep.subr.mxu0 0.0
    %217 = vmatpush2.msra.mxu0 0.0
    %218 = vmatprep.subr.mxu0 0.0
    %219 = vmatpush2.msra.mxu0 0.0
    %220 = vmatprep.subr.mxu0 0.0
    %221 = vmatpush2.msra.mxu0 0.0
    %222 = vmatprep.subr.mxu0 0.0
    %223 = vmatpush2.msra.mxu0 0.0
    %224 = vmatprep.mubr.f32.mxu0 0.0
    %225 = vmatmul.mubr.f32.gmra.mxu0 %v143
    %v226 = vpop.f32.mrf.mxu0
    %v227 = vadd.f32 0.0, %v226
    %v228 = vpop.f32.mrf.mxu0
    %229 = vdwg.mxu0
    %s230 = smul.u32 0, 8
    %v231 = vlaneseq
    %v232 = vshrl.u32 %v231, 7
    %v233 = vstv %s230
    %v234 = vadd.s32 %v233, %v232
    %vm235 = vcmp.lt.s32.totalorder %v234, 8
    %v236 = vsel %vm235, 1, 0
    %vm237 = vcmp.eq.s32.totalorder %v236, 1
    %v238 = vsel %vm237, %v227, 0.0
    %v239 = vrot.slane %v238, 4
    %v240 = vadd.f32 %v238, %v239
    %v241 = vrot.slane %v240, 2
    %v242 = vadd.f32 %v240, %v241
    %v243 = vrot.slane %v242, 1
    %v244 = vadd.f32 %v242, %v243
    %v245 = vmul.f32 %v238, %v238
    %v246 = vrot.slane %v245, 4
    %v247 = vadd.f32 %v245, %v246
    %v248 = vrot.slane %v247, 2
    %v249 = vadd.f32 %v247, %v248
    %v250 = vrot.slane %v249, 1
    %v251 = vadd.f32 %v249, %v250
    %vm252 = vcmask 1040384
    %v253 = vsel %vm252, %v244, %v251
    %254 = vst [vmem:[#allocation8] sm:$0x3] %v253
    // Predicated region
    $region30: #{tpu_custom_call.1} parent=1 // pred_check
      _
    $region31: #{tpu_custom_call.1} parent=1 // pred_check_branch
      %256 = sbr.rel (0) target = $region33
    $region32: #{tpu_custom_call.1} parent=1 // pred_region
      %s258 = ssub.s32 128, 128
      %259 = vsyncadd [#allocation4], %s258
      %s261 = sshll.u32 [#allocation8], 4
      %s262 = int_to_ptr.vmem [resolvable:$true] %s261
      %264 = dma.vmem_to_hbm [thread:$0]  %s262, 128, %s4, [#allocation4]
    $region33: #{tpu_custom_call.1} parent=1 // pred_fallthru
      _
    // Predicated region
    $region34: #{tpu_custom_call.1} parent=1 // pred_check
      _
    $region35: #{tpu_custom_call.1} parent=1 // pred_check_branch
      %266 = sbr.rel (0) target = $region37
    $region36: #{tpu_custom_call.1} parent=1 // pred_region
      %267 = dma.done [#allocation4], 128
    $region37: #{tpu_custom_call.1} parent=1 // pred_fallthru
      _
    %268 = vsyncpa [#allocation3], 1
    %269 = vsyncpa [#allocation6], 1
    %270 = vsyncpa [#allocation4], 1

</llo_original>
